<compile_context>
chip_gen: v6e
topology: v6e:2x2x1
jax: 0.10.0
libtpu: 0.0.40
codegen_flags: <defaults>
</compile_context>

<pallas_src>
import functools

import jax
import jax.numpy as jnp
from jax import lax
from jax.experimental import pallas as pl
from jax.experimental.pallas import tpu as pltpu


def _channel_attention_kernel(x_ref, w0_ref, w1_ref, o_ref, sum_ref, max_ref,
                              *, t_hw, hw):
    # x_ref  : (1, C, t_hw) x.dtype   channels on sublanes, spatial on lanes
    # w0_ref : (C2, C)                Conv2d(C, C2, 1) weight (squeezed)
    # w1_ref : (C, C2)                Conv2d(C2, C, 1) weight (squeezed)
    # o_ref  : (1, C, 1)    x.dtype   per-batch channel-attention column
    # sum_ref: (C, 1) f32 running sum; max_ref: (C, 1) f32 running max
    k = pl.program_id(1)
    nk = pl.num_programs(1)
    c = x_ref.shape[1]

    @pl.when(k == 0)
    def _init():
        sum_ref[...] = jnp.zeros((c, 1), jnp.float32)
        max_ref[...] = jnp.full((c, 1), -jnp.inf, jnp.float32)

    x = x_ref[0].astype(jnp.float32)  # (C, t_hw), accumulate in f32

    def _accumulate(xs, xm):
        sum_ref[...] = sum_ref[...] + jnp.sum(xs, axis=-1, keepdims=True)
        max_ref[...] = jnp.maximum(max_ref[...],
                                   jnp.max(xm, axis=-1, keepdims=True))

    if hw % t_hw == 0:
        _accumulate(x, x)
    else:
        # Ragged last tile: mask out-of-range lanes (sum->0, max->-inf), but
        # only on the final grid step; full tiles run the plain path.
        @pl.when(k < nk - 1)
        def _full_tile():
            _accumulate(x, x)

        @pl.when(k == nk - 1)
        def _ragged_tile():
            col = lax.broadcasted_iota(jnp.int32, x.shape, 1) + k * t_hw
            valid = col < hw
            _accumulate(jnp.where(valid, x, 0.0),
                        jnp.where(valid, x, -jnp.inf))

    @pl.when(k == nk - 1)
    def _finalize():
        w0 = w0_ref[...].astype(jnp.float32)  # (C2, C)
        w1 = w1_ref[...].astype(jnp.float32)  # (C, C2)

        def mlp(v):  # v: (C, 1)
            h = jnp.maximum(
                jnp.dot(w0, v, preferred_element_type=jnp.float32), 0.0)
            return jnp.dot(w1, h, preferred_element_type=jnp.float32)

        avg = sum_ref[...] * (1.0 / hw)
        y = mlp(avg) + mlp(max_ref[...])  # (C, 1)
        o_ref[0] = jax.nn.sigmoid(y).astype(o_ref.dtype)


def _round_up(v, m):
    return -(-v // m) * m


def _vmem_plan():
    """Per-generation VMEM plan: (x streaming budget, vmem_limit_bytes)."""
    try:
        cap = int(pltpu.get_tpu_info().vmem_capacity_bytes)
    except Exception:
        cap = 64 << 20  # conservative (v7x-sized) fallback
    vmem_limit = min((cap * 3) // 4, 96 << 20)  # v5e/v6e: 96 MiB, v7x: 48 MiB
    x_budget = min(cap // 2, 48 << 20)          # v5e/v6e: 48 MiB, v7x: 32 MiB
    return x_budget, vmem_limit


def _choose_hw_tile(hw, c, itemsize, x_budget_bytes, cap_lanes=None):
    """Largest lane tile (multiple of 128, or full HW) whose double-buffered
    (C, t_hw) block -- counted with sublane padding -- fits the budget."""
    bytes_per_col = 2 * _round_up(max(c, 1), 8) * itemsize  # double-buffered
    t = max(x_budget_bytes // bytes_per_col, 128)
    if cap_lanes is not None:
        t = min(t, max(int(cap_lanes), 128))
    if t >= hw:
        return hw  # single full-extent tile (always a legal block dim)
    return max(128, (t // 128) * 128)  # lane tiles must be multiples of 128


def channel_attention(x, w0, w1, *, max_tile_hw=None):
    """x: (B, C, H, W); w0: (C//2, C); w1: (C, C//2).  Returns (B, C, 1, 1)."""
    B, C, H, W = x.shape
    C2 = w0.shape[0]
    assert w0.shape == (C2, C) and w1.shape == (C, C2)
    HW = H * W

    # Native NCHW layout, flattened spatial dims: a free reshape, no transpose,
    # no dtype cast (x streams in its own dtype; f32 accumulation is in-kernel).
    x3 = x.reshape(B, C, HW)
    itemsize = jnp.dtype(x3.dtype).itemsize

    x_budget, vmem_limit = _vmem_plan()

    # Weights: padded VMEM footprint; single-buffer them (pl.Buffered(1)) when
    # default double-buffering would eat a big slice of the budget (v7x, big C).
    w_itemsize = jnp.dtype(w0.dtype).itemsize
    w_bytes = (_round_up(C2, 8) * _round_up(C, 128) +
               _round_up(C, 8) * _round_up(C2, 128)) * w_itemsize
    single_buffer_w = 2 * w_bytes > (8 << 20)
    w_kwargs = {"pipeline_mode": pl.Buffered(1)} if single_buffer_w else {}
    w_buffers = 1 if single_buffer_w else 2

    # Size the streamed x block by padded bytes against what's left of budget.
    x_block_budget = max(4 << 20, x_budget - w_buffers * w_bytes)
    t_hw = _choose_hw_tile(HW, C, itemsize, x_block_budget, cap_lanes=max_tile_hw)
    num_k = pl.cdiv(HW, t_hw)

    kernel = functools.partial(_channel_attention_kernel, t_hw=t_hw, hw=HW)

    cost = pl.CostEstimate(
        flops=2 * B * C * HW + 8 * B * C * C2,  # pooling + per-head MLPs
        transcendentals=B * C,                  # sigmoid
        bytes_accessed=itemsize * B * C * (HW + 1) + 2 * w_itemsize * C * C2,
    )

    out = pl.pallas_call(
        kernel,
        out_shape=jax.ShapeDtypeStruct((B, C, 1), x.dtype),
        grid=(B, num_k),
        in_specs=[
            pl.BlockSpec((1, C, t_hw), lambda b, k: (b, 0, k)),
            pl.BlockSpec((C2, C), lambda b, k: (0, 0), **w_kwargs),
            pl.BlockSpec((C, C2), lambda b, k: (0, 0), **w_kwargs),
        ],
        out_specs=pl.BlockSpec((1, C, 1), lambda b, k: (b, 0, 0)),
        scratch_shapes=[pltpu.VMEM((C, 1), jnp.float32),
                        pltpu.VMEM((C, 1), jnp.float32)],
        compiler_params=pltpu.CompilerParams(
            dimension_semantics=("parallel", "arbitrary"),
            vmem_limit_bytes=vmem_limit,
        ),
        cost_estimate=cost,
    )(x3, w0, w1)

    return out.reshape(B, C, 1, 1)


def _reference(x, w0, w1):
    # Pure-JAX reference mirroring the PyTorch forward (in f32).
    xf = x.astype(jnp.float32)
    avg = jnp.mean(xf, axis=(2, 3))  # (B, C)
    mx = jnp.max(xf, axis=(2, 3))    # (B, C)

    def mlp(v):
        return jnp.maximum(v @ w0.T, 0.0) @ w1.T

    out = jax.nn.sigmoid(mlp(avg) + mlp(mx))
    return out[:, :, None, None]


if __name__ == "__main__":
    key = jax.random.PRNGKey(0)
    kx, k0, k1, kx2 = jax.random.split(key, 4)

    # Small shapes consistent with the module.
    B, C, H, W = 2, 4, 16, 16
    C2 = C // 2  # module hard-codes in_ch // 2 (ignores `reduction`)

    x = jax.random.normal(kx, (B, C, H, W), dtype=jnp.float32)
    w0 = jax.random.normal(k0, (C2, C), dtype=jnp.float32) * 0.1
    w1 = jax.random.normal(k1, (C, C2), dtype=jnp.float32) * 0.1

    out = channel_attention(x, w0, w1)
    jax.block_until_ready(out)
    ref = _reference(x, w0, w1)
    assert out.shape == (B, C, 1, 1)
    assert jnp.allclose(out, ref, atol=1e-5, rtol=1e-5)

    # Multi-tile spatial streaming + ragged last tile (HW = 255, tile = 128).
    H2, W2 = 15, 17
    x2 = jax.random.normal(kx2, (B, C, H2, W2), dtype=jnp.float32)
    out2 = channel_attention(x2, w0, w1, max_tile_hw=128)
    jax.block_until_ready(out2)
    ref2 = _reference(x2, w0, w1)
    assert jnp.allclose(out2, ref2, atol=1e-5, rtol=1e-5)

    # bf16 streaming path (v5e feedback): stream native dtype, f32 accumulate.
    xb = x2.astype(jnp.bfloat16)
    out3 = channel_attention(xb, w0, w1, max_tile_hw=128)
    jax.block_until_ready(out3)
    ref3 = _reference(xb, w0, w1)
    assert out3.dtype == jnp.bfloat16
    assert jnp.allclose(out3.astype(jnp.float32), ref3, atol=2e-2, rtol=0.0)

    print("KERNEL_OK")
</pallas_src>

<mosaic_0001>
module attributes {stable_mosaic.version = 11 : i64} {
  func.func @_channel_attention_kernel(%arg0: i32, %arg1: i32, %arg2: memref<1x4x256xf32, #tpu.memory_space<vmem>>, %arg3: memref<2x4xf32, #tpu.memory_space<vmem>>, %arg4: memref<4x2xf32, #tpu.memory_space<vmem>>, %arg5: memref<1x4x1xf32, #tpu.memory_space<vmem>>, %arg6: memref<4x1xf32, #tpu.memory_space<vmem>>, %arg7: memref<4x1xf32, #tpu.memory_space<vmem>>) attributes {dimension_semantics = [#tpu.dimension_semantics<parallel>, #tpu.dimension_semantics<arbitrary>], iteration_bounds = array<i64: 2, 1>, scalar_prefetch = 0 : i64, scratch_operands = 2 : i64, tpu.core_type = #tpu.core_type<tc>, window_params = [{transform_indices = @transform_0, window_bounds = array<i64: 1, 4, 256>}, {pipeline_mode = #tpu.pipeline_mode<synchronous>, transform_indices = @transform_1, window_bounds = array<i64: 2, 4>}, {pipeline_mode = #tpu.pipeline_mode<synchronous>, transform_indices = @transform_2, window_bounds = array<i64: 4, 2>}, {transform_indices = @transform_3, window_bounds = array<i64: 1, 4, 1>}]} {
    %c0_i32 = arith.constant 0 : i32
    %0 = arith.cmpi eq, %arg1, %c0_i32 : i32
    %1 = arith.extui %0 : i1 to i32
    %c0_i32_0 = arith.constant 0 : i32
    %2 = arith.cmpi ne, %1, %c0_i32_0 : i32
    scf.if %2 {
      %cst_14 = arith.constant 0.000000e+00 : f32
      %18 = vector.broadcast %cst_14 : f32 to vector<4x1xf32>
      %c0_15 = arith.constant 0 : index
      %c0_16 = arith.constant 0 : index
      %19 = vector.load %arg6[%c0_15, %c0_16] : memref<4x1xf32, #tpu.memory_space<vmem>>, vector<4x1xf32>
      tpu.vector_store %arg6[%c0_15, %c0_16], %18 {strides = array<i32>} : memref<4x1xf32, #tpu.memory_space<vmem>>, vector<4x1xf32>,
      %cst_17 = arith.constant 0xFF800000 : f32
      %20 = vector.broadcast %cst_17 : f32 to vector<4x1xf32>
      %c0_18 = arith.constant 0 : index
      %c0_19 = arith.constant 0 : index
      %21 = vector.load %arg7[%c0_18, %c0_19] : memref<4x1xf32, #tpu.memory_space<vmem>>, vector<4x1xf32>
      tpu.vector_store %arg7[%c0_18, %c0_19], %20 {strides = array<i32>} : memref<4x1xf32, #tpu.memory_space<vmem>>, vector<4x1xf32>,
    } else {
    }
    %c0 = arith.constant 0 : index
    %c0_1 = arith.constant 0 : index
    %c0_2 = arith.constant 0 : index
    %3 = vector.load %arg2[%c0, %c0_1, %c0_2] : memref<1x4x256xf32, #tpu.memory_space<vmem>>, vector<1x4x256xf32>
    %4 = vector.shape_cast %3 : vector<1x4x256xf32> to vector<4x256xf32>
    %c0_3 = arith.constant 0 : index
    %c0_4 = arith.constant 0 : index
    %5 = vector.load %arg6[%c0_3, %c0_4] : memref<4x1xf32, #tpu.memory_space<vmem>>, vector<4x1xf32>
    %cst = arith.constant dense<0.000000e+00> : vector<4xf32>
    %6 = vector.multi_reduction <add>, %4, %cst [1] : vector<4x256xf32> to vector<4xf32>
    %7 = vector.shape_cast %6 : vector<4xf32> to vector<4x1xf32>
    %8 = arith.addf %5, %7 : vector<4x1xf32>
    %c0_5 = arith.constant 0 : index
    %c0_6 = arith.constant 0 : index
    %9 = vector.load %arg6[%c0_5, %c0_6] : memref<4x1xf32, #tpu.memory_space<vmem>>, vector<4x1xf32>
    tpu.vector_store %arg6[%c0_5, %c0_6], %8 {strides = array<i32>} : memref<4x1xf32, #tpu.memory_space<vmem>>, vector<4x1xf32>,
    %c0_7 = arith.constant 0 : index
    %c0_8 = arith.constant 0 : index
    %10 = vector.load %arg7[%c0_7, %c0_8] : memref<4x1xf32, #tpu.memory_space<vmem>>, vector<4x1xf32>
    %cst_9 = arith.constant dense<0xFF800000> : vector<4xf32>
    %11 = vector.multi_reduction <maximumf>, %4, %cst_9 [1] : vector<4x256xf32> to vector<4xf32>
    %12 = vector.shape_cast %11 : vector<4xf32> to vector<4x1xf32>
    %13 = arith.maximumf %10, %12 : vector<4x1xf32>
    %c0_10 = arith.constant 0 : index
    %c0_11 = arith.constant 0 : index
    %14 = vector.load %arg7[%c0_10, %c0_11] : memref<4x1xf32, #tpu.memory_space<vmem>>, vector<4x1xf32>
    tpu.vector_store %arg7[%c0_10, %c0_11], %13 {strides = array<i32>} : memref<4x1xf32, #tpu.memory_space<vmem>>, vector<4x1xf32>,
    %c0_i32_12 = arith.constant 0 : i32
    %15 = arith.cmpi eq, %arg1, %c0_i32_12 : i32
    %16 = arith.extui %15 : i1 to i32
    %c0_i32_13 = arith.constant 0 : i32
    %17 = arith.cmpi ne, %16, %c0_i32_13 : i32
    scf.if %17 {
      %c0_14 = arith.constant 0 : index
      %c0_15 = arith.constant 0 : index
      %18 = vector.load %arg3[%c0_14, %c0_15] : memref<2x4xf32, #tpu.memory_space<vmem>>, vector<2x4xf32>
      %c0_16 = arith.constant 0 : index
      %c0_17 = arith.constant 0 : index
      %19 = vector.load %arg4[%c0_16, %c0_17] : memref<4x2xf32, #tpu.memory_space<vmem>>, vector<4x2xf32>
      %c0_18 = arith.constant 0 : index
      %c0_19 = arith.constant 0 : index
      %20 = vector.load %arg6[%c0_18, %c0_19] : memref<4x1xf32, #tpu.memory_space<vmem>>, vector<4x1xf32>
      %cst_20 = arith.constant 3.906250e-03 : f32
      %21 = vector.broadcast %cst_20 : f32 to vector<4x1xf32>
      %22 = arith.mulf %20, %21 : vector<4x1xf32>
      %cst_21 = arith.constant dense<0.000000e+00> : vector<2x1xf32>
      %23 = tpu.matmul %18, %22, %cst_21 {dimension_numbers = #tpu.dot_dimension_numbers<[1], [0], [0], [1], [0, 0, 1, 1], [], []>} : vector<2x4xf32>, vector<4x1xf32>, vector<2x1xf32> -> vector<2x1xf32>
      %cst_22 = arith.constant 0.000000e+00 : f32
      %24 = vector.broadcast %cst_22 : f32 to vector<2x1xf32>
      %25 = arith.maximumf %23, %24 : vector<2x1xf32>
      %cst_23 = arith.constant dense<0.000000e+00> : vector<4x1xf32>
      %26 = tpu.matmul %19, %25, %cst_23 {dimension_numbers = #tpu.dot_dimension_numbers<[1], [0], [0], [1], [0, 0, 1, 1], [], []>} : vector<4x2xf32>, vector<2x1xf32>, vector<4x1xf32> -> vector<4x1xf32>
      %c0_24 = arith.constant 0 : index
      %c0_25 = arith.constant 0 : index
      %27 = vector.load %arg7[%c0_24, %c0_25] : memref<4x1xf32, #tpu.memory_space<vmem>>, vector<4x1xf32>
      %cst_26 = arith.constant dense<0.000000e+00> : vector<2x1xf32>
      %28 = tpu.matmul %18, %27, %cst_26 {dimension_numbers = #tpu.dot_dimension_numbers<[1], [0], [0], [1], [0, 0, 1, 1], [], []>} : vector<2x4xf32>, vector<4x1xf32>, vector<2x1xf32> -> vector<2x1xf32>
      %cst_27 = arith.constant 0.000000e+00 : f32
      %29 = vector.broadcast %cst_27 : f32 to vector<2x1xf32>
      %30 = arith.maximumf %28, %29 : vector<2x1xf32>
      %cst_28 = arith.constant dense<0.000000e+00> : vector<4x1xf32>
      %31 = tpu.matmul %19, %30, %cst_28 {dimension_numbers = #tpu.dot_dimension_numbers<[1], [0], [0], [1], [0, 0, 1, 1], [], []>} : vector<4x2xf32>, vector<2x1xf32>, vector<4x1xf32> -> vector<4x1xf32>
      %32 = arith.addf %26, %31 : vector<4x1xf32>
      %33 = arith.negf %32 : vector<4x1xf32>
      %34 = math.exp %33 : vector<4x1xf32>
      %cst_29 = arith.constant 1.000000e+00 : f32
      %35 = vector.broadcast %cst_29 : f32 to vector<4x1xf32>
      %36 = arith.addf %35, %34 : vector<4x1xf32>
      %37 = arith.divf %35, %36 : vector<4x1xf32>
      %c0_30 = arith.constant 0 : index
      %c0_31 = arith.constant 0 : index
      %c0_32 = arith.constant 0 : index
      %38 = vector.load %arg5[%c0_30, %c0_31, %c0_32] : memref<1x4x1xf32, #tpu.memory_space<vmem>>, vector<1x4x1xf32>
      %39 = vector.shape_cast %38 : vector<1x4x1xf32> to vector<4x1xf32>
      %40 = vector.shape_cast %37 : vector<4x1xf32> to vector<1x4x1xf32>
      tpu.vector_store %arg5[%c0_30, %c0_31, %c0_32], %40 {strides = array<i32>} : memref<1x4x1xf32, #tpu.memory_space<vmem>>, vector<1x4x1xf32>,
    } else {
    }
    return
  }
  func.func @transform_0(%arg0: i32, %arg1: i32) -> (i32, i32, i32) {
    %c0_i32 = arith.constant 0 : i32
    %c0_i32_0 = arith.constant 0 : i32
    return %arg0, %c0_i32, %arg1 : i32, i32, i32
  }
  func.func @transform_1(%arg0: i32, %arg1: i32) -> (i32, i32) {
    %c0_i32 = arith.constant 0 : i32
    %c0_i32_0 = arith.constant 0 : i32
    %c0_i32_1 = arith.constant 0 : i32
    return %c0_i32, %c0_i32_0 : i32, i32
  }
  func.func @transform_2(%arg0: i32, %arg1: i32) -> (i32, i32) {
    %c0_i32 = arith.constant 0 : i32
    %c0_i32_0 = arith.constant 0 : i32
    %c0_i32_1 = arith.constant 0 : i32
    return %c0_i32, %c0_i32_0 : i32, i32
  }
  func.func @transform_3(%arg0: i32, %arg1: i32) -> (i32, i32, i32) {
    %c0_i32 = arith.constant 0 : i32
    %c0_i32_0 = arith.constant 0 : i32
    %c0_i32_1 = arith.constant 0 : i32
    return %arg0, %c0_i32, %c0_i32_0 : i32, i32, i32
  }
}

</mosaic_0001>

<llo_original>
// kernel: tpu_custom_call.1
$region0: #{tpu_custom_call.1}
  #allocation0 [shape = 'u32[]', space=smem, size = 0x4, offset = 0x4, fixed_abs, tag = 'smem constant byte address 0x4 - core index']
  #allocation1 [shape = 'u32[144,128]{1,0:T(1,128)}', space=vmem, size = 0x12000, scoped, tag = 'internal scratch']
  #allocation2 [shape = 'f32[4,1]{1,0:T(4,128)}', space=vmem, size = 0x800, scoped, tag = 'scratch operand']
  #allocation3 [shape = 'f32[4,1]{1,0:T(4,128)}', space=vmem, size = 0x800, scoped, tag = 'scratch operand']
  %s0 = inlined_call_operand.hbm [shape: f32[2,4,256], index: 0, kind: input, shape index: {}]
  %s1 = inlined_call_operand.vmem [shape: f32[2,4], index: 1, kind: input, shape index: {}]
  %s2 = inlined_call_operand.vmem [shape: f32[4,2], index: 2, kind: input, shape index: {}]
  %s3 = inlined_call_operand.vmem [shape: f32[2,4,1], index: 3, kind: output, shape index: {}]
  %s4 = sld [smem:[#allocation0]]
  $region57: #{tpu_custom_call.1} parent=0
    _
  %s6 = ssub.s32 1, %s4
  %s7 = scalar_select 0, %s6, %s4
  $region1: #{tpu_custom_call.1} parent=0
    #allocation4 [shape = 'u8[8192]{0}', space=vmem, size = 0x2000, scoped, tag = 'input window, operand 0']
    #allocation5 [shape = 's32[2]{0}', space=sflag, size = 0x8, scoped, tag = 'scoped memory for tpu_custom_call.1']
    %8 = vsyncpa [#allocation5], 0
    %s9 = scalar_lea.sflag [#allocation5], 1
    %10 = vsyncpa %s9, 0
    loop: start=0, step=1, limit=4
    $region2: #{tpu_custom_call.1} parent=1 // loop_pre_header
      _
    $region3: #{tpu_custom_call.1} parent=1 // loop_header
      %s12 = sphi 0, %s16
      %p13 = scmp.ge.s32.totalorder %s12, 4
      %s19 = sphi 0, %s31
      %s20 = sphi 0, %s27
      %s21 = sphi 0, %s19
      %s22 = sphi 0, %s20
      %s23 = sphi 0, %s21
      %s24 = sphi 0, %s22
      %s36 = sphi 0, %s38
      %s39 = sphi 0, %s36
      %s40 = sphi 0, %s39
      %s56 = sphi 0, %s40
      %s60 = sphi 0, %s60
      %s62 = sphi 0, %s60
      %s63 = sphi 0, %s62
      %s77 = sphi 0, %s63
      %s81 = sphi 0, %s81
      %s83 = sphi 0, %s81
      %s84 = sphi 0, %s83
      %s98 = sphi 0, %s84
      %s104 = sphi 0, %s106
      %s107 = sphi 0, %s104
      %s108 = sphi 0, %s107
      %s124 = sphi 0, %s108
    $region4: #{tpu_custom_call.1} parent=1 // loop_header_branch
      %15 = sbr.rel (%p13) target = $region8
    $region5: #{tpu_custom_call.1} parent=1 // loop_body
      %s17 = ssub.s32 %s12, 1
      %s18 = ssub.s32 %s12, 2
      %s25 = sadd.s32 1, %s20
      %p26 = scmp.ge.s32.totalorder %s25, 1
      %s27 = scalar_select %p26, 0, %s25
      %s28 = sadd.s32 1, %s19
      %s29 = scalar_select %p26, %s28, %s19
      %p30 = scmp.ge.s32.totalorder %s29, 2
      %s31 = scalar_select %p30, 0, %s29
      %s32 = ssub.s32 %s19, %s31
      %s33 = ssub.s32 %s20, %s27
      %s34 = sor.u32 %s32, %s33
      %p35 = scmp.eq.s32.totalorder %s34, 0
      %s37 = sadd.s32 %s36, 1
      %s38 = scalar_select %p35, %s36, %s37
      %p41 = pneg %p35
      %p42 = scmp.eq.s32.totalorder %s12, 1
      %p43 = por %p41, %p42
      %p44 = scmp.ne.s32.totalorder %s36, %s39
      %p45 = scmp.eq.s32.totalorder %s12, 0
      %p46 = por %p44, %p45
      %p47 = scmp.ne.s32.totalorder %s36, %s39
      %p48 = scmp.eq.s32.totalorder %s17, 1
      %p49 = por %p47, %p48
      %p50 = scmp.ne.s32.totalorder %s39, %s40
      %p51 = scmp.eq.s32.totalorder %s17, 0
      %p52 = por %p50, %p51
      %p53 = scmp.ne.s32.totalorder %s39, %s40
      %p54 = scmp.eq.s32.totalorder %s18, 1
      %p55 = por %p53, %p54
      %p57 = scmp.ne.s32.totalorder %s40, %s56
      %p58 = scmp.eq.s32.totalorder %s18, 0
      %p59 = por %p57, %p58
      %s61 = sadd.s32 %s60, 1
      %p64 = scmp.eq.s32.totalorder %s12, 1
      %p65 = scmp.ne.s32.totalorder %s60, %s62
      %p66 = scmp.eq.s32.totalorder %s12, 0
      %p67 = por %p65, %p66
      %p68 = scmp.ne.s32.totalorder %s60, %s62
      %p69 = scmp.eq.s32.totalorder %s17, 1
      %p70 = por %p68, %p69
      %p71 = scmp.ne.s32.totalorder %s62, %s63
      %p72 = scmp.eq.s32.totalorder %s17, 0
      %p73 = por %p71, %p72
      %p74 = scmp.ne.s32.totalorder %s62, %s63
      %p75 = scmp.eq.s32.totalorder %s18, 1
      %p76 = por %p74, %p75
      %p78 = scmp.ne.s32.totalorder %s63, %s77
      %p79 = scmp.eq.s32.totalorder %s18, 0
      %p80 = por %p78, %p79
      %s82 = sadd.s32 %s81, 1
      %p85 = scmp.eq.s32.totalorder %s12, 1
      %p86 = scmp.ne.s32.totalorder %s81, %s83
      %p87 = scmp.eq.s32.totalorder %s12, 0
      %p88 = por %p86, %p87
      %p89 = scmp.ne.s32.totalorder %s81, %s83
      %p90 = scmp.eq.s32.totalorder %s17, 1
      %p91 = por %p89, %p90
      %p92 = scmp.ne.s32.totalorder %s83, %s84
      %p93 = scmp.eq.s32.totalorder %s17, 0
      %p94 = por %p92, %p93
      %p95 = scmp.ne.s32.totalorder %s83, %s84
      %p96 = scmp.eq.s32.totalorder %s18, 1
      %p97 = por %p95, %p96
      %p99 = scmp.ne.s32.totalorder %s84, %s98
      %p100 = scmp.eq.s32.totalorder %s18, 0
      %p101 = por %p99, %p100
      %s102 = ssub.s32 %s19, %s31
      %p103 = scmp.eq.s32.totalorder %s102, 0
      %s105 = sadd.s32 %s104, 1
      %s106 = scalar_select %p103, %s104, %s105
      %p109 = pneg %p103
      %p110 = scmp.eq.s32.totalorder %s12, 1
      %p111 = por %p109, %p110
      %p112 = scmp.ne.s32.totalorder %s104, %s107
      %p113 = scmp.eq.s32.totalorder %s12, 0
      %p114 = por %p112, %p113
      %p115 = scmp.ne.s32.totalorder %s104, %s107
      %p116 = scmp.eq.s32.totalorder %s17, 1
      %p117 = por %p115, %p116
      %p118 = scmp.ne.s32.totalorder %s107, %s108
      %p119 = scmp.eq.s32.totalorder %s17, 0
      %p120 = por %p118, %p119
      %p121 = scmp.ne.s32.totalorder %s107, %s108
      %p122 = scmp.eq.s32.totalorder %s18, 1
      %p123 = por %p121, %p122
      %p125 = scmp.ne.s32.totalorder %s108, %s124
      %p126 = scmp.eq.s32.totalorder %s18, 0
      %p127 = por %p125, %p126
      %p128 = scmp.le.s32.totalorder 1, %s12
      %p129 = scmp.lt.s32.totalorder %s12, 3
      %p130 = pnand %p128, %p129
      %p131 = pneg %p130
      // Predicated region
      $region9: #{tpu_custom_call.1} parent=5 // pred_check
        _
      $region10: #{tpu_custom_call.1} parent=5 // pred_check_branch
        %133 = sbr.rel (%p130) target = $region12
      $region11: #{tpu_custom_call.1} parent=5 // pred_region
        %s134 = ssub.s32 %s12, 1
        // Predicated region
        $region13: #{tpu_custom_call.1} parent=11 // pred_check
          %p135 = pneg %p73
        $region14: #{tpu_custom_call.1} parent=11 // pred_check_branch
          %137 = sbr.rel (%p135) target = $region16
        $region15: #{tpu_custom_call.1} parent=11 // pred_region
          _
        $region16: #{tpu_custom_call.1} parent=11 // pred_fallthru
          _
        // Predicated region
        $region17: #{tpu_custom_call.1} parent=11 // pred_check
          %p138 = pneg %p94
        $region18: #{tpu_custom_call.1} parent=11 // pred_check_branch
          %140 = sbr.rel (%p138) target = $region20
        $region19: #{tpu_custom_call.1} parent=11 // pred_region
          _
        $region20: #{tpu_custom_call.1} parent=11 // pred_fallthru
          _
      $region12: #{tpu_custom_call.1} parent=5 // pred_fallthru
        _
      %p141 = scmp.lt.s32.totalorder %s12, 2
      // Predicated region
      $region21: #{tpu_custom_call.1} parent=5 // pred_check
        %p142 = pneg %p141
      $region22: #{tpu_custom_call.1} parent=5 // pred_check_branch
        %144 = sbr.rel (%p142) target = $region24
      $region23: #{tpu_custom_call.1} parent=5 // pred_region
        // Predicated region
        $region25: #{tpu_custom_call.1} parent=23 // pred_check
          %p145 = pneg %p46
        $region26: #{tpu_custom_call.1} parent=23 // pred_check_branch
          %147 = sbr.rel (%p145) target = $region28
        $region27: #{tpu_custom_call.1} parent=23 // pred_region
          %s148 = sand.u32 %s36, 1
          %s149 = scalar_lea.sflag [#allocation5], %s148
          %s150 = sand.u32 %s36, 1
          %s151 = smul.addr %s150, 8
          %s152 = scalar_lea.vmem [#allocation4], %s151
          %s153 = smul.u32 2, %s20
          %s155 = ssub.s32 128, 128
          %156 = vsyncadd %s149, %s155
          %s157 = smul.addr %s19, 2
          %s158 = sadd.s32 %s153, %s157
          %s159 = smul.addr %s158, 64
          %s160 = scalar_lea.hbm %s0, %s159
          %s162 = sshll.u32 %s152, 4
          %s163 = int_to_ptr.vmem [resolvable:$true] %s162
          %165 = dma.hbm_to_vmem [thread:$0]  %s160, 128, %s163, %s149
        $region28: #{tpu_custom_call.1} parent=23 // pred_fallthru
          _
      $region24: #{tpu_custom_call.1} parent=5 // pred_fallthru
        _
      %p166 = scmp.le.s32.totalorder 1, %s12
      %p167 = scmp.lt.s32.totalorder %s12, 3
      %p168 = pnand %p166, %p167
      %p169 = pneg %p168
      // Predicated region
      $region29: #{tpu_custom_call.1} parent=5 // pred_check
        _
      $region30: #{tpu_custom_call.1} parent=5 // pred_check_branch
        %171 = sbr.rel (%p168) target = $region32
      $region31: #{tpu_custom_call.1} parent=5 // pred_region
        %s172 = ssub.s32 %s12, 1
        %s173 = sand.u32 %s39, 1
        %s174 = scalar_lea.sflag [#allocation5], %s173
        %s175 = sand.u32 %s39, 1
        %s176 = smul.addr %s175, 8
        %s177 = scalar_lea.vmem [#allocation4], %s176
        // Predicated region
        $region33: #{tpu_custom_call.1} parent=31 // pred_check
          %p178 = pneg %p52
        $region34: #{tpu_custom_call.1} parent=31 // pred_check_branch
          %180 = sbr.rel (%p178) target = $region36
        $region35: #{tpu_custom_call.1} parent=31 // pred_region
          %181 = dma.done %s174, 128
        $region36: #{tpu_custom_call.1} parent=31 // pred_fallthru
          _
        %s182 = sand.u32 %s39, 1
        %s183 = scalar_lea.sflag [#allocation5], %s182
        %s184 = sand.u32 %s39, 1
        %s185 = smul.addr %s184, 8
        %s186 = scalar_lea.vmem [#allocation4], %s185
        %p187 = pneg %p52
        %p188 = pneg %p49
        %p189 = pneg %p73
        %p190 = pneg %p70
        %p191 = pneg %p94
        %p192 = pneg %p91
        %p193 = pneg %p120
        %p194 = pneg %p117
        %p195 = scmp.lt.s32.totalorder %s21, 1
        %s196 = scalar_select %p195, %s21, 1
        %s197 = smul.addr %s196, 4
        %s198 = scalar_lea.vmem %s3, %s197
        %s199 = smul.u32 2, %s22
        %p200 = scmp.lt.s32.totalorder %s21, 1
        %s201 = scalar_select %p200, %s21, 1
        %s202 = smul.addr %s201, 4
        %s203 = scalar_lea.vmem %s3, %s202
        %p204 = scmp.eq.s32.totalorder %s22, 0
        // Predicated region
        $region37: #{tpu_custom_call.1} parent=31 // pred_check
          %p205 = pneg %p204
        $region38: #{tpu_custom_call.1} parent=31 // pred_check_branch
          %207 = sbr.rel (%p205) target = $region40
        $region39: #{tpu_custom_call.1} parent=31 // pred_region
          %vm208 = vcmask 3072
          %209 = vst.msk [vmem:[#allocation2] sm:$0xf] %vm208, 0.0
          %210 = vst.msk [vmem:[#allocation3] sm:$0xf] %vm208, -inf
        $region40: #{tpu_custom_call.1} parent=31 // pred_fallthru
          _
        %v211 = vld [vmem:[%s177] sm:$0xff]
        %v212 = vld [vmem:[#allocation2] sm:$0xf]
        %v214 = vcombine.high %v211, %v211
        %vm216 = vcmask 1043456
        %v217 = vsel %vm216, %v211, 0.0
        %v218 = vsel %vm216, %v214, 0.0
        %v219 = vadd.f32 %v217, %v218
        %220 = vadd.xlane.f32.xlu0 %v219
        %v221 = vpop.xlane.xlu0 %220
        %v222 = vadd.f32 %v212, %v221
        %vm223 = vcmask 3072
        %224 = vst.msk [vmem:[#allocation2] sm:$0xf] %vm223, %v222
        %v225 = vld [vmem:[#allocation3] sm:$0xf]
        %v226 = vsel %vm216, %v211, -inf
        %v227 = vsel %vm216, %v214, -inf
        %v228 = vmax.f32 %v226, %v227
        %229 = vmax.xlane.f32.xlu0 %v228
        %v230 = vpop.xlane.xlu0 %229
        %v231 = vmax.f32 %v225, %v230
        %232 = vst.msk [vmem:[#allocation3] sm:$0xf] %vm223, %v231
        // Predicated region
        $region41: #{tpu_custom_call.1} parent=31 // pred_check
          %p233 = pneg %p204
        $region42: #{tpu_custom_call.1} parent=31 // pred_check_branch
          %235 = sbr.rel (%p233) target = $region44
        $region43: #{tpu_custom_call.1} parent=31 // pred_region
          %v236 = vld [vmem:[%s1] sm:$0x3]
          %v237 = vld [vmem:[%s2] sm:$0xf]
          %v238 = vld [vmem:[#allocation2] sm:$0xf]
          %v239 = vmul.f32 %v238, 0.00390625
          %vm240 = vcmask 31744
          %v242 = vsel %vm240, %v236, 0
          %v245 = vsel %vm216, %v239, 0
          %247 = vmatprep.subr.mxu0 0.0
          %248 = vmatpush1.msra.mxu0 0.0
          %249 = vmatprep.subr.mxu0 0.0
          %250 = vmatpush1.msra.mxu0 0.0
          %251 = vmatprep.subr.mxu0 0.0
          %252 = vmatpush1.msra.mxu0 0.0
          %253 = vmatprep.subr.mxu0 0.0
          %254 = vmatpush1.msra.mxu0 0.0
          %255 = vmatprep.subr.mxu0 0.0
          %256 = vmatpush1.msra.mxu0 0.0
          %257 = vmatprep.subr.mxu0 0.0
          %258 = vmatpush1.msra.mxu0 0.0
          %259 = vmatprep.subr.mxu0 0.0
          %260 = vmatpush1.msra.mxu0 0.0
          %261 = vmatprep.subr.mxu0 0.0
          %262 = vmatpush1.msra.mxu0 0.0
          %263 = vmatprep.subr.mxu0 0.0
          %264 = vmatpush1.msra.mxu0 0.0
          %265 = vmatprep.subr.mxu0 0.0
          %266 = vmatpush1.msra.mxu0 0.0
          %267 = vmatprep.subr.mxu0 0.0
          %268 = vmatpush1.msra.mxu0 0.0
          %269 = vmatprep.subr.mxu0 0.0
          %270 = vmatpush1.msra.mxu0 0.0
          %271 = vmatprep.subr.mxu0 0.0
          %272 = vmatpush1.msra.mxu0 0.0
          %273 = vmatprep.subr.mxu0 0.0
          %274 = vmatpush1.msra.mxu0 0.0
          %275 = vmatprep.subr.mxu0 0.0
          %276 = vmatpush1.msra.mxu0 0.0
          %277 = vmatprep.subr.mxu0 0.0
          %278 = vmatpush1.msra.mxu0 %v245
          %279 = vmatprep.subr.mxu0 0.0
          %280 = vmatpush2.msra.mxu0 0.0
          %281 = vmatprep.subr.mxu0 0.0
          %282 = vmatpush2.msra.mxu0 0.0
          %283 = vmatprep.subr.mxu0 0.0
          %284 = vmatpush2.msra.mxu0 0.0
          %285 = vmatprep.subr.mxu0 0.0
          %286 = vmatpush2.msra.mxu0 0.0
          %287 = vmatprep.subr.mxu0 0.0
          %288 = vmatpush2.msra.mxu0 0.0
          %289 = vmatprep.subr.mxu0 0.0
          %290 = vmatpush2.msra.mxu0 0.0
          %291 = vmatprep.subr.mxu0 0.0
          %292 = vmatpush2.msra.mxu0 0.0
          %293 = vmatprep.subr.mxu0 0.0
          %294 = vmatpush2.msra.mxu0 0.0
          %295 = vmatprep.subr.mxu0 0.0
          %296 = vmatpush2.msra.mxu0 0.0
          %297 = vmatprep.subr.mxu0 0.0
          %298 = vmatpush2.msra.mxu0 0.0
          %299 = vmatprep.subr.mxu0 0.0
          %300 = vmatpush2.msra.mxu0 0.0
          %301 = vmatprep.subr.mxu0 0.0
          %302 = vmatpush2.msra.mxu0 0.0
          %303 = vmatprep.subr.mxu0 0.0
          %304 = vmatpush2.msra.mxu0 0.0
          %305 = vmatprep.subr.mxu0 0.0
          %306 = vmatpush2.msra.mxu0 0.0
          %307 = vmatprep.subr.mxu0 0.0
          %308 = vmatpush2.msra.mxu0 0.0
          %309 = vmatprep.subr.mxu0 0.0
          %310 = vmatpush2.msra.mxu0 0.0
          %311 = vmatprep.mubr.f32.mxu0 0.0
          %312 = vmatmul.mubr.f32.gmra.mxu0 %v242
          %v313 = vpop.f32.mrf.mxu0
          %v314 = vadd.f32 0.0, %v313
          %v315 = vpop.f32.mrf.mxu0
          %316 = vdwg.mxu0
          %v317 = vmax.f32 %v314, 0.0
          %v318 = vld [vmem:[#allocation3] sm:$0xf]
          %v320 = vsel %vm216, %v318, 0
          %322 = vmatprep.subr.mxu0 0.0
          %323 = vmatpush1.msra.mxu0 0.0
          %324 = vmatprep.subr.mxu0 0.0
          %325 = vmatpush1.msra.mxu0 0.0
          %326 = vmatprep.subr.mxu0 0.0
          %327 = vmatpush1.msra.mxu0 0.0
          %328 = vmatprep.subr.mxu0 0.0
          %329 = vmatpush1.msra.mxu0 0.0
          %330 = vmatprep.subr.mxu0 0.0
          %331 = vmatpush1.msra.mxu0 0.0
          %332 = vmatprep.subr.mxu0 0.0
          %333 = vmatpush1.msra.mxu0 0.0
          %334 = vmatprep.subr.mxu0 0.0
          %335 = vmatpush1.msra.mxu0 0.0
          %336 = vmatprep.subr.mxu0 0.0
          %337 = vmatpush1.msra.mxu0 0.0
          %338 = vmatprep.subr.mxu0 0.0
          %339 = vmatpush1.msra.mxu0 0.0
          %340 = vmatprep.subr.mxu0 0.0
          %341 = vmatpush1.msra.mxu0 0.0
          %342 = vmatprep.subr.mxu0 0.0
          %343 = vmatpush1.msra.mxu0 0.0
          %344 = vmatprep.subr.mxu0 0.0
          %345 = vmatpush1.msra.mxu0 0.0
          %346 = vmatprep.subr.mxu0 0.0
          %347 = vmatpush1.msra.mxu0 0.0
          %348 = vmatprep.subr.mxu0 0.0
          %349 = vmatpush1.msra.mxu0 0.0
          %350 = vmatprep.subr.mxu0 0.0
          %351 = vmatpush1.msra.mxu0 0.0
          %352 = vmatprep.subr.mxu0 0.0
          %353 = vmatpush1.msra.mxu0 %v320
          %354 = vmatprep.subr.mxu0 0.0
          %355 = vmatpush2.msra.mxu0 0.0
          %356 = vmatprep.subr.mxu0 0.0
          %357 = vmatpush2.msra.mxu0 0.0
          %358 = vmatprep.subr.mxu0 0.0
          %359 = vmatpush2.msra.mxu0 0.0
          %360 = vmatprep.subr.mxu0 0.0
          %361 = vmatpush2.msra.mxu0 0.0
          %362 = vmatprep.subr.mxu0 0.0
          %363 = vmatpush2.msra.mxu0 0.0
          %364 = vmatprep.subr.mxu0 0.0
          %365 = vmatpush2.msra.mxu0 0.0
          %366 = vmatprep.subr.mxu0 0.0
          %367 = vmatpush2.msra.mxu0 0.0
          %368 = vmatprep.subr.mxu0 0.0
          %369 = vmatpush2.msra.mxu0 0.0
          %370 = vmatprep.subr.mxu0 0.0
          %371 = vmatpush2.msra.mxu0 0.0
          %372 = vmatprep.subr.mxu0 0.0
          %373 = vmatpush2.msra.mxu0 0.0
          %374 = vmatprep.subr.mxu0 0.0
          %375 = vmatpush2.msra.mxu0 0.0
          %376 = vmatprep.subr.mxu0 0.0
          %377 = vmatpush2.msra.mxu0 0.0
          %378 = vmatprep.subr.mxu0 0.0
          %379 = vmatpush2.msra.mxu0 0.0
          %380 = vmatprep.subr.mxu0 0.0
          %381 = vmatpush2.msra.mxu0 0.0
          %382 = vmatprep.subr.mxu0 0.0
          %383 = vmatpush2.msra.mxu0 0.0
          %384 = vmatprep.subr.mxu0 0.0
          %385 = vmatpush2.msra.mxu0 0.0
          %386 = vmatprep.mubr.f32.mxu0 0.0
          %387 = vmatmul.mubr.f32.gmra.mxu0 %v242
          %v388 = vpop.f32.mrf.mxu0
          %v389 = vadd.f32 0.0, %v388
          %v390 = vpop.f32.mrf.mxu0
          %391 = vdwg.mxu0
          %v392 = vmax.f32 %v389, 0.0
          %vm393 = vcmask 15360
          %v395 = vsel %vm393, %v237, 0
          %vm397 = vcmask 1041408
          %v399 = vsel %vm397, %v392, 0
          %401 = vmatprep.subr.mxu0 0.0
          %402 = vmatpush1.msra.mxu0 0.0
          %403 = vmatprep.subr.mxu0 0.0
          %404 = vmatpush1.msra.mxu0 0.0
          %405 = vmatprep.subr.mxu0 0.0
          %406 = vmatpush1.msra.mxu0 0.0
          %407 = vmatprep.subr.mxu0 0.0
          %408 = vmatpush1.msra.mxu0 0.0
          %409 = vmatprep.subr.mxu0 0.0
          %410 = vmatpush1.msra.mxu0 0.0
          %411 = vmatprep.subr.mxu0 0.0
          %412 = vmatpush1.msra.mxu0 0.0
          %413 = vmatprep.subr.mxu0 0.0
          %414 = vmatpush1.msra.mxu0 0.0
          %415 = vmatprep.subr.mxu0 0.0
          %416 = vmatpush1.msra.mxu0 0.0
          %417 = vmatprep.subr.mxu0 0.0
          %418 = vmatpush1.msra.mxu0 0.0
          %419 = vmatprep.subr.mxu0 0.0
          %420 = vmatpush1.msra.mxu0 0.0
          %421 = vmatprep.subr.mxu0 0.0
          %422 = vmatpush1.msra.mxu0 0.0
          %423 = vmatprep.subr.mxu0 0.0
          %424 = vmatpush1.msra.mxu0 0.0
          %425 = vmatprep.subr.mxu0 0.0
          %426 = vmatpush1.msra.mxu0 0.0
          %427 = vmatprep.subr.mxu0 0.0
          %428 = vmatpush1.msra.mxu0 0.0
          %429 = vmatprep.subr.mxu0 0.0
          %430 = vmatpush1.msra.mxu0 0.0
          %431 = vmatprep.subr.mxu0 0.0
          %432 = vmatpush1.msra.mxu0 %v399
          %433 = vmatprep.subr.mxu0 0.0
          %434 = vmatpush2.msra.mxu0 0.0
          %435 = vmatprep.subr.mxu0 0.0
          %436 = vmatpush2.msra.mxu0 0.0
          %437 = vmatprep.subr.mxu0 0.0
          %438 = vmatpush2.msra.mxu0 0.0
          %439 = vmatprep.subr.mxu0 0.0
          %440 = vmatpush2.msra.mxu0 0.0
          %441 = vmatprep.subr.mxu0 0.0
          %442 = vmatpush2.msra.mxu0 0.0
          %443 = vmatprep.subr.mxu0 0.0
          %444 = vmatpush2.msra.mxu0 0.0
          %445 = vmatprep.subr.mxu0 0.0
          %446 = vmatpush2.msra.mxu0 0.0
          %447 = vmatprep.subr.mxu0 0.0
          %448 = vmatpush2.msra.mxu0 0.0
          %449 = vmatprep.subr.mxu0 0.0
          %450 = vmatpush2.msra.mxu0 0.0
          %451 = vmatprep.subr.mxu0 0.0
          %452 = vmatpush2.msra.mxu0 0.0
          %453 = vmatprep.subr.mxu0 0.0
          %454 = vmatpush2.msra.mxu0 0.0
          %455 = vmatprep.subr.mxu0 0.0
          %456 = vmatpush2.msra.mxu0 0.0
          %457 = vmatprep.subr.mxu0 0.0
          %458 = vmatpush2.msra.mxu0 0.0
          %459 = vmatprep.subr.mxu0 0.0
          %460 = vmatpush2.msra.mxu0 0.0
          %461 = vmatprep.subr.mxu0 0.0
          %462 = vmatpush2.msra.mxu0 0.0
          %463 = vmatprep.subr.mxu0 0.0
          %464 = vmatpush2.msra.mxu0 0.0
          %465 = vmatprep.mubr.f32.mxu0 0.0
          %466 = vmatmul.mubr.f32.gmra.mxu0 %v395
          %v467 = vpop.f32.mrf.mxu0
          %v468 = vadd.f32 0.0, %v467
          %v469 = vpop.f32.mrf.mxu0
          %470 = vdwg.mxu0
          %v472 = vsel %vm397, %v317, 0
          %474 = vmatprep.subr.mxu0 0.0
          %475 = vmatpush1.msra.mxu0 0.0
          %476 = vmatprep.subr.mxu0 0.0
          %477 = vmatpush1.msra.mxu0 0.0
          %478 = vmatprep.subr.mxu0 0.0
          %479 = vmatpush1.msra.mxu0 0.0
          %480 = vmatprep.subr.mxu0 0.0
          %481 = vmatpush1.msra.mxu0 0.0
          %482 = vmatprep.subr.mxu0 0.0
          %483 = vmatpush1.msra.mxu0 0.0
          %484 = vmatprep.subr.mxu0 0.0
          %485 = vmatpush1.msra.mxu0 0.0
          %486 = vmatprep.subr.mxu0 0.0
          %487 = vmatpush1.msra.mxu0 0.0
          %488 = vmatprep.subr.mxu0 0.0
          %489 = vmatpush1.msra.mxu0 0.0
          %490 = vmatprep.subr.mxu0 0.0
          %491 = vmatpush1.msra.mxu0 0.0
          %492 = vmatprep.subr.mxu0 0.0
          %493 = vmatpush1.msra.mxu0 0.0
          %494 = vmatprep.subr.mxu0 0.0
          %495 = vmatpush1.msra.mxu0 0.0
          %496 = vmatprep.subr.mxu0 0.0
          %497 = vmatpush1.msra.mxu0 0.0
          %498 = vmatprep.subr.mxu0 0.0
          %499 = vmatpush1.msra.mxu0 0.0
          %500 = vmatprep.subr.mxu0 0.0
          %501 = vmatpush1.msra.mxu0 0.0
          %502 = vmatprep.subr.mxu0 0.0
          %503 = vmatpush1.msra.mxu0 0.0
          %504 = vmatprep.subr.mxu0 0.0
          %505 = vmatpush1.msra.mxu0 %v472
          %506 = vmatprep.subr.mxu0 0.0
          %507 = vmatpush2.msra.mxu0 0.0
          %508 = vmatprep.subr.mxu0 0.0
          %509 = vmatpush2.msra.mxu0 0.0
          %510 = vmatprep.subr.mxu0 0.0
          %511 = vmatpush2.msra.mxu0 0.0
          %512 = vmatprep.subr.mxu0 0.0
          %513 = vmatpush2.msra.mxu0 0.0
          %514 = vmatprep.subr.mxu0 0.0
          %515 = vmatpush2.msra.mxu0 0.0
          %516 = vmatprep.subr.mxu0 0.0
          %517 = vmatpush2.msra.mxu0 0.0
          %518 = vmatprep.subr.mxu0 0.0
          %519 = vmatpush2.msra.mxu0 0.0
          %520 = vmatprep.subr.mxu0 0.0
          %521 = vmatpush2.msra.mxu0 0.0
          %522 = vmatprep.subr.mxu0 0.0
          %523 = vmatpush2.msra.mxu0 0.0
          %524 = vmatprep.subr.mxu0 0.0
          %525 = vmatpush2.msra.mxu0 0.0
          %526 = vmatprep.subr.mxu0 0.0
          %527 = vmatpush2.msra.mxu0 0.0
          %528 = vmatprep.subr.mxu0 0.0
          %529 = vmatpush2.msra.mxu0 0.0
          %530 = vmatprep.subr.mxu0 0.0
          %531 = vmatpush2.msra.mxu0 0.0
          %532 = vmatprep.subr.mxu0 0.0
          %533 = vmatpush2.msra.mxu0 0.0
          %534 = vmatprep.subr.mxu0 0.0
          %535 = vmatpush2.msra.mxu0 0.0
          %536 = vmatprep.subr.mxu0 0.0
          %537 = vmatpush2.msra.mxu0 0.0
          %538 = vmatprep.mubr.f32.mxu0 0.0
          %539 = vmatmul.mubr.f32.gmra.mxu0 %v395
          %v540 = vpop.f32.mrf.mxu0
          %v541 = vadd.f32 %v468, %v540
          %v542 = vpop.f32.mrf.mxu0
          %543 = vdwg.mxu0
          %v544 = vxor.u32 %v541, 2147483648
          %v545 = vmul.f32 %v544, 1.442695
          %v546 = vpow.pop %v545
          %v547 = vadd.f32 %v546, 1.0
          %v548 = vrcp.pop %v547
          %v549 = vmul.f32 1.0, %v548
          %550 = vst.msk [vmem:[%s203] sm:$0xf] %vm223, %v549
        $region44: #{tpu_custom_call.1} parent=31 // pred_fallthru
          _
        %p551 = scmp.lt.s32.totalorder %s21, 1
        %s552 = scalar_select %p551, %s21, 1
        %s553 = smul.addr %s552, 4
        %s554 = scalar_lea.vmem %s3, %s553
        // Predicated region
        $region45: #{tpu_custom_call.1} parent=31 // pred_check
          %p555 = pneg %p117
        $region46: #{tpu_custom_call.1} parent=31 // pred_check_branch
          %557 = sbr.rel (%p555) target = $region48
        $region47: #{tpu_custom_call.1} parent=31 // pred_region
          _
        $region48: #{tpu_custom_call.1} parent=31 // pred_fallthru
          _
      $region32: #{tpu_custom_call.1} parent=5 // pred_fallthru
        _
      %p558 = scmp.le.s32.totalorder 2, %s12
      // Predicated region
      $region49: #{tpu_custom_call.1} parent=5 // pred_check
        %p559 = pneg %p558
      $region50: #{tpu_custom_call.1} parent=5 // pred_check_branch
        %561 = sbr.rel (%p559) target = $region52
      $region51: #{tpu_custom_call.1} parent=5 // pred_region
        %s562 = ssub.s32 %s12, 2
        // Predicated region
        $region53: #{tpu_custom_call.1} parent=51 // pred_check
          %p563 = pneg %p123
        $region54: #{tpu_custom_call.1} parent=51 // pred_check_branch
          %565 = sbr.rel (%p563) target = $region56
        $region55: #{tpu_custom_call.1} parent=51 // pred_region
          %p566 = scmp.lt.s32.totalorder %s23, 1
          %s567 = scalar_select %p566, %s23, 1
          %s568 = smul.addr %s567, 4
          %s569 = scalar_lea.vmem %s3, %s568
        $region56: #{tpu_custom_call.1} parent=51 // pred_fallthru
          _
      $region52: #{tpu_custom_call.1} parent=5 // pred_fallthru
        _
    $region6: #{tpu_custom_call.1} parent=1 // loop_footer
      %s16 = sadd.s32 1, %s12
    $region7: #{tpu_custom_call.1} parent=1 // loop_footer_branch
      %11 = sbr.rel target = $region3
    $region8: #{tpu_custom_call.1} parent=1 // loop_exit
      _
    %570 = vsyncpa [#allocation5], 1
    %s571 = scalar_lea.sflag [#allocation5], 1
    %572 = vsyncpa %s571, 1

</llo_original>
